<compile_context>
chip_gen: v7x
topology: tpu7x:2x2x1
jax: 0.10.0
libtpu: 0.0.40
codegen_flags: <defaults>
</compile_context>

<pallas_src>
import jax
import jax.numpy as jnp
from jax.experimental import pallas as pl
from jax.experimental.pallas import tpu as pltpu

INPUT_DIMS = 200
HIDDEN = 256
OUT = 1


def _round_up(n, m):
    return ((n + m - 1) // m) * m


def _num_tensorcores_per_chip():
    """Best-effort TC-per-device query; defaults to 1 (v5e/v6e behavior)."""
    try:
        info = pltpu.get_tpu_info()
        for name in ("num_cores", "core_count", "tensorcore_count",
                     "num_tensorcores", "cores_per_chip"):
            v = getattr(info, name, None)
            if isinstance(v, int) and v > 0:
                return v
    except Exception:
        pass
    try:
        dev = jax.devices()[0]
        for name in ("num_cores", "core_count"):
            v = getattr(dev, name, None)
            if isinstance(v, int) and v > 0:
                return v
    except Exception:
        pass
    return 1


def _choose_bm(batch, num_cores, bm_max=1024):
    """Batch tile (multiple of 8 for f32 sublane packing).

    Single-TC: one tile as big as possible (per-step overhead dominates).
    Multi-TC: once the batch is large enough, target >= 2 grid steps per core
    so the 'parallel' grid shards across cores AND each core still pipelines.
    """
    b8 = _round_up(max(batch, 1), 8)
    if num_cores > 1:
        min_steps = 2 * num_cores
        if b8 >= 128 * min_steps:
            bm = _round_up(pl.cdiv(b8, min_steps), 8)
            return min(bm, bm_max)
    return min(b8, bm_max)


def _mlp_kernel(x_ref, w1_ref, b1_ref, w2_ref, b2_ref, w3_ref, b3_ref, o_ref):
    bf16 = jnp.bfloat16
    # Cast f32 x tile to bf16 in-kernel (VPU slack) instead of a wrapper pass.
    x = x_ref[...].astype(bf16)
    # Layer 1: (bm, F)bf16 @ (F, H)bf16 -> f32 accumulate; bias + ReLU in f32.
    h1 = jnp.dot(x, w1_ref[...], preferred_element_type=jnp.float32)
    h1 = jnp.maximum(h1 + b1_ref[...], 0.0)
    # Layer 2: (bm, H) @ (H, H)
    h2 = jnp.dot(h1.astype(bf16), w2_ref[...], preferred_element_type=jnp.float32)
    h2 = jnp.maximum(h2 + b2_ref[...], 0.0)
    # Layer 3: (bm, H) @ (H, 1) -- plain MXU matmul, no h2 transpose risk.
    out = jnp.dot(h2.astype(bf16), w3_ref[...], preferred_element_type=jnp.float32)
    o_ref[...] = (out + b3_ref[...]).astype(o_ref.dtype)


def nn1d_forward(x, params, *, bm_max=1024):
    """x: (B, INPUT_DIMS) float32 -> (B, 1) float32."""
    w1, b1, w2, b2, w3, b3 = params
    B, F = x.shape
    H = w1.shape[1]
    assert F == w1.shape[0]

    num_cores = _num_tensorcores_per_chip()
    bm = _choose_bm(B, num_cores, bm_max)
    num_tiles = pl.cdiv(B, bm)

    # bf16 operands for the MXU (one-time tiny casts); biases stay f32.
    w1_bf = w1.astype(jnp.bfloat16)
    w2_bf = w2.astype(jnp.bfloat16)
    w3_bf = w3.reshape(H, OUT).astype(jnp.bfloat16)
    b1_f = b1.reshape(1, H).astype(jnp.float32)
    b2_f = b2.reshape(1, H).astype(jnp.float32)
    b3_f = b3.reshape(1, OUT).astype(jnp.float32)

    flops = 2 * B * (F * H + H * H + H * OUT)
    bytes_accessed = (B * F * 4 + B * OUT * 4                 # x in, out
                      + (F * H + H * H + H * OUT) * 2         # bf16 weights
                      + (2 * H + OUT) * 4)                    # f32 biases

    out = pl.pallas_call(
        _mlp_kernel,
        out_shape=jax.ShapeDtypeStruct((B, OUT), jnp.float32),
        grid_spec=pltpu.PrefetchScalarGridSpec(
            num_scalar_prefetch=0,
            grid=(num_tiles,),
            in_specs=[
                pl.BlockSpec((bm, F), lambda i: (i, 0)),        # x tile (f32)
                pl.BlockSpec((F, H), lambda i: (0, 0)),         # W1 (resident)
                pl.BlockSpec((1, H), lambda i: (0, 0)),         # b1
                pl.BlockSpec((H, H), lambda i: (0, 0)),         # W2
                pl.BlockSpec((1, H), lambda i: (0, 0)),         # b2
                pl.BlockSpec((H, OUT), lambda i: (0, 0)),       # W3 column
                pl.BlockSpec((1, OUT), lambda i: (0, 0)),       # b3
            ],
            out_specs=pl.BlockSpec((bm, OUT), lambda i: (i, 0)),
        ),
        compiler_params=pltpu.CompilerParams(
            dimension_semantics=("parallel",)),
        cost_estimate=pl.CostEstimate(
            flops=flops, transcendentals=0, bytes_accessed=bytes_accessed),
    )(x, w1_bf, b1_f, w2_bf, b2_f, w3_bf, b3_f)
    return out


def init_params(key):
    """Deterministic xavier-uniform-style init for the three Linear layers."""
    k1, k2, k3 = jax.random.split(key, 3)

    def xavier(k, fan_in, fan_out):
        limit = jnp.sqrt(6.0 / (fan_in + fan_out))
        return jax.random.uniform(
            k, (fan_in, fan_out), jnp.float32, minval=-limit, maxval=limit)

    w1 = xavier(k1, INPUT_DIMS, HIDDEN)
    b1 = jnp.zeros((1, HIDDEN), jnp.float32)
    w2 = xavier(k2, HIDDEN, HIDDEN)
    b2 = jnp.zeros((1, HIDDEN), jnp.float32)
    w3 = xavier(k3, HIDDEN, OUT)
    b3 = jnp.zeros((1, OUT), jnp.float32)
    return (w1, b1, w2, b2, w3, b3)


def nn1d_reference(x, params):
    """Pure-f32 reference (matches the PyTorch module numerics)."""
    w1, b1, w2, b2, w3, b3 = params
    h1 = jnp.maximum(x @ w1 + b1, 0.0)
    h2 = jnp.maximum(h1 @ w2 + b2, 0.0)
    return h2 @ w3 + b3


def nn1d_reference_bf16(x, params):
    """Reference mirroring the kernel's bf16-matmul / f32-accumulate math."""
    w1, b1, w2, b2, w3, b3 = params
    bf = jnp.bfloat16
    h1 = jnp.maximum(
        jnp.dot(x.astype(bf), w1.astype(bf),
                preferred_element_type=jnp.float32) + b1, 0.0)
    h2 = jnp.maximum(
        jnp.dot(h1.astype(bf), w2.astype(bf),
                preferred_element_type=jnp.float32) + b2, 0.0)
    return jnp.dot(h2.astype(bf), w3.astype(bf),
                   preferred_element_type=jnp.float32) + b3


if __name__ == "__main__":
    key = jax.random.PRNGKey(0)
    kx, kp = jax.random.split(key)
    params = init_params(kp)

    # (B, bm_max): B=8 exact single tile; B=20 exercises a clipped partial
    # block (bm=24 > B, no wrapper pad); B=300 with bm_max=128 exercises a
    # 3-step "parallel" grid whose last block is partial.
    for B, bmx in ((8, 1024), (20, 1024), (300, 128)):
        xb = jax.random.normal(jax.random.fold_in(kx, B),
                               (B, INPUT_DIMS), jnp.float32)
        out = jax.block_until_ready(nn1d_forward(xb, params, bm_max=bmx))
        assert out.shape == (B, OUT), out.shape

        ref_bf = nn1d_reference_bf16(xb, params)
        assert jnp.allclose(out, ref_bf, atol=5e-3, rtol=5e-3), (
            B, float(jnp.max(jnp.abs(out - ref_bf))))

        ref_f32 = nn1d_reference(xb, params)
        assert jnp.allclose(out, ref_f32, atol=1e-1, rtol=1e-1), (
            B, float(jnp.max(jnp.abs(out - ref_f32))))

    print("KERNEL_OK")
</pallas_src>

<mosaic_0001>
module attributes {stable_mosaic.version = 11 : i64} {
  func.func @_mlp_kernel(%arg0: i32, %arg1: memref<8x200xf32, #tpu.memory_space<vmem>>, %arg2: memref<200x256xbf16, #tpu.memory_space<vmem>>, %arg3: memref<1x256xf32, #tpu.memory_space<vmem>>, %arg4: memref<256x256xbf16, #tpu.memory_space<vmem>>, %arg5: memref<1x256xf32, #tpu.memory_space<vmem>>, %arg6: memref<256x1xbf16, #tpu.memory_space<vmem>>, %arg7: memref<1x1xf32, #tpu.memory_space<vmem>>, %arg8: memref<8x1xf32, #tpu.memory_space<vmem>>) attributes {dimension_semantics = [#tpu.dimension_semantics<parallel>], iteration_bounds = array<i64: 1>, scalar_prefetch = 0 : i64, scratch_operands = 0 : i64, tpu.core_type = #tpu.core_type<tc>, window_params = [{transform_indices = @transform_0, window_bounds = array<i64: 8, 200>}, {pipeline_mode = #tpu.pipeline_mode<synchronous>, transform_indices = @transform_1, window_bounds = array<i64: 200, 256>}, {pipeline_mode = #tpu.pipeline_mode<synchronous>, transform_indices = @transform_2, window_bounds = array<i64: 1, 256>}, {pipeline_mode = #tpu.pipeline_mode<synchronous>, transform_indices = @transform_3, window_bounds = array<i64: 256, 256>}, {pipeline_mode = #tpu.pipeline_mode<synchronous>, transform_indices = @transform_4, window_bounds = array<i64: 1, 256>}, {pipeline_mode = #tpu.pipeline_mode<synchronous>, transform_indices = @transform_5, window_bounds = array<i64: 256, 1>}, {pipeline_mode = #tpu.pipeline_mode<synchronous>, transform_indices = @transform_6, window_bounds = array<i64: 1, 1>}, {transform_indices = @transform_7, window_bounds = array<i64: 8, 1>}]} {
    %c0 = arith.constant 0 : index
    %c0_0 = arith.constant 0 : index
    %0 = vector.load %arg1[%c0, %c0_0] : memref<8x200xf32, #tpu.memory_space<vmem>>, vector<8x200xf32>
    %1 = arith.truncf %0 : vector<8x200xf32> to vector<8x200xbf16>
    %c0_1 = arith.constant 0 : index
    %c0_2 = arith.constant 0 : index
    %2 = vector.load %arg2[%c0_1, %c0_2] : memref<200x256xbf16, #tpu.memory_space<vmem>>, vector<200x256xbf16>
    %cst = arith.constant dense<0.000000e+00> : vector<8x256xf32>
    %3 = tpu.matmul %1, %2, %cst {dimension_numbers = #tpu.dot_dimension_numbers<[1], [0], [0], [1], [0, 0, 1, 1], [], []>} : vector<8x200xbf16>, vector<200x256xbf16>, vector<8x256xf32> -> vector<8x256xf32>
    %c0_3 = arith.constant 0 : index
    %c0_4 = arith.constant 0 : index
    %4 = vector.load %arg3[%c0_3, %c0_4] : memref<1x256xf32, #tpu.memory_space<vmem>>, vector<1x256xf32>
    %5 = vector.broadcast %4 : vector<1x256xf32> to vector<8x256xf32>
    %6 = arith.addf %3, %5 : vector<8x256xf32>
    %cst_5 = arith.constant 0.000000e+00 : f32
    %7 = vector.broadcast %cst_5 : f32 to vector<8x256xf32>
    %8 = arith.maximumf %6, %7 : vector<8x256xf32>
    %9 = arith.truncf %8 : vector<8x256xf32> to vector<8x256xbf16>
    %c0_6 = arith.constant 0 : index
    %c0_7 = arith.constant 0 : index
    %10 = vector.load %arg4[%c0_6, %c0_7] : memref<256x256xbf16, #tpu.memory_space<vmem>>, vector<256x256xbf16>
    %cst_8 = arith.constant dense<0.000000e+00> : vector<8x256xf32>
    %11 = tpu.matmul %9, %10, %cst_8 {dimension_numbers = #tpu.dot_dimension_numbers<[1], [0], [0], [1], [0, 0, 1, 1], [], []>} : vector<8x256xbf16>, vector<256x256xbf16>, vector<8x256xf32> -> vector<8x256xf32>
    %c0_9 = arith.constant 0 : index
    %c0_10 = arith.constant 0 : index
    %12 = vector.load %arg5[%c0_9, %c0_10] : memref<1x256xf32, #tpu.memory_space<vmem>>, vector<1x256xf32>
    %13 = vector.broadcast %12 : vector<1x256xf32> to vector<8x256xf32>
    %14 = arith.addf %11, %13 : vector<8x256xf32>
    %cst_11 = arith.constant 0.000000e+00 : f32
    %15 = vector.broadcast %cst_11 : f32 to vector<8x256xf32>
    %16 = arith.maximumf %14, %15 : vector<8x256xf32>
    %17 = arith.truncf %16 : vector<8x256xf32> to vector<8x256xbf16>
    %c0_12 = arith.constant 0 : index
    %c0_13 = arith.constant 0 : index
    %18 = vector.load %arg6[%c0_12, %c0_13] : memref<256x1xbf16, #tpu.memory_space<vmem>>, vector<256x1xbf16>
    %cst_14 = arith.constant dense<0.000000e+00> : vector<8x1xf32>
    %19 = tpu.matmul %17, %18, %cst_14 {dimension_numbers = #tpu.dot_dimension_numbers<[1], [0], [0], [1], [0, 0, 1, 1], [], []>} : vector<8x256xbf16>, vector<256x1xbf16>, vector<8x1xf32> -> vector<8x1xf32>
    %c0_15 = arith.constant 0 : index
    %c0_16 = arith.constant 0 : index
    %20 = vector.load %arg7[%c0_15, %c0_16] : memref<1x1xf32, #tpu.memory_space<vmem>>, vector<1x1xf32>
    %21 = vector.broadcast %20 : vector<1x1xf32> to vector<8x1xf32>
    %22 = arith.addf %19, %21 : vector<8x1xf32>
    %c0_17 = arith.constant 0 : index
    %c0_18 = arith.constant 0 : index
    %23 = vector.load %arg8[%c0_17, %c0_18] : memref<8x1xf32, #tpu.memory_space<vmem>>, vector<8x1xf32>
    tpu.vector_store %arg8[%c0_17, %c0_18], %22 {strides = array<i32>} : memref<8x1xf32, #tpu.memory_space<vmem>>, vector<8x1xf32>,
    return
  }
  func.func @transform_0(%arg0: i32) -> (i32, i32) {
    %c0_i32 = arith.constant 0 : i32
    %c0_i32_0 = arith.constant 0 : i32
    return %arg0, %c0_i32 : i32, i32
  }
  func.func @transform_1(%arg0: i32) -> (i32, i32) {
    %c0_i32 = arith.constant 0 : i32
    %c0_i32_0 = arith.constant 0 : i32
    %c0_i32_1 = arith.constant 0 : i32
    return %c0_i32, %c0_i32_0 : i32, i32
  }
  func.func @transform_2(%arg0: i32) -> (i32, i32) {
    %c0_i32 = arith.constant 0 : i32
    %c0_i32_0 = arith.constant 0 : i32
    %c0_i32_1 = arith.constant 0 : i32
    return %c0_i32, %c0_i32_0 : i32, i32
  }
  func.func @transform_3(%arg0: i32) -> (i32, i32) {
    %c0_i32 = arith.constant 0 : i32
    %c0_i32_0 = arith.constant 0 : i32
    %c0_i32_1 = arith.constant 0 : i32
    return %c0_i32, %c0_i32_0 : i32, i32
  }
  func.func @transform_4(%arg0: i32) -> (i32, i32) {
    %c0_i32 = arith.constant 0 : i32
    %c0_i32_0 = arith.constant 0 : i32
    %c0_i32_1 = arith.constant 0 : i32
    return %c0_i32, %c0_i32_0 : i32, i32
  }
  func.func @transform_5(%arg0: i32) -> (i32, i32) {
    %c0_i32 = arith.constant 0 : i32
    %c0_i32_0 = arith.constant 0 : i32
    %c0_i32_1 = arith.constant 0 : i32
    return %c0_i32, %c0_i32_0 : i32, i32
  }
  func.func @transform_6(%arg0: i32) -> (i32, i32) {
    %c0_i32 = arith.constant 0 : i32
    %c0_i32_0 = arith.constant 0 : i32
    %c0_i32_1 = arith.constant 0 : i32
    return %c0_i32, %c0_i32_0 : i32, i32
  }
  func.func @transform_7(%arg0: i32) -> (i32, i32) {
    %c0_i32 = arith.constant 0 : i32
    %c0_i32_0 = arith.constant 0 : i32
    return %arg0, %c0_i32 : i32, i32
  }
}

</mosaic_0001>

<llo_original>
// kernel: tpu_custom_call.1
$region0: #{tpu_custom_call.1}
  #allocation0 [shape = 'u32[]', space=smem, size = 0x4, offset = 0x4, fixed_abs, tag = 'smem constant byte address 0x4 - core index']
  #allocation1 [shape = 'u32[144,128]{1,0:T(1,128)}', space=vmem, size = 0x12000, scoped, tag = 'internal scratch']
  #allocation2 [shape = 'f32[1,1]{1,0:T(1,128)S(1)}', space=vmem, size = 0x200, scoped, tag = 'scoped memory for tpu_custom_call.1']
  %s0 = inlined_call_operand.vmem [shape: f32[8,200], index: 0, kind: input, shape index: {}]
  %s1 = inlined_call_operand.hbm [shape: bf16[200,256], index: 1, kind: input, shape index: {}]
  %s2 = inlined_call_operand.vmem [shape: f32[1,256], index: 2, kind: input, shape index: {}]
  %s3 = inlined_call_operand.hbm [shape: bf16[256,256], index: 3, kind: input, shape index: {}]
  %s4 = inlined_call_operand.vmem [shape: f32[1,256], index: 4, kind: input, shape index: {}]
  %s5 = inlined_call_operand.vmem [shape: bf16[256,1], index: 5, kind: input, shape index: {}]
  %s6 = inlined_call_operand.<no memory space> [shape: f32[1,1], index: 6, kind: input, shape index: {}]
  %s7 = inlined_call_operand.vmem [shape: f32[8,1], index: 7, kind: output, shape index: {}]
  %s8 = sld [smem:[#allocation0]]
  $region46: #{tpu_custom_call.1} parent=0
    _
  %s10 = ssub.s32 1, %s8
  %s11 = scalar_select 0, %s10, %s8
  %v12 = vstv %s6
  %13 = vst [vmem:[#allocation2] sm:$0x1] %v12
  $region1: #{tpu_custom_call.1} parent=0
    #allocation3 [shape = 'u8[102400]{0}', space=vmem, size = 0x19000, scoped, tag = 'input window, operand 1, single buffered']
    #allocation4 [shape = 's32[1]{0}', space=sflag, size = 0x4, scoped, tag = 'scoped memory for tpu_custom_call.1']
    #allocation5 [shape = 'u8[131072]{0}', space=vmem, size = 0x20000, scoped, tag = 'input window, operand 3, single buffered']
    #allocation6 [shape = 's32[1]{0}', space=sflag, size = 0x4, scoped, tag = 'scoped memory for tpu_custom_call.1']
    %14 = vsyncpa [#allocation4], 0
    %15 = vsyncpa [#allocation6], 0
    // Predicated region
    $region2: #{tpu_custom_call.1} parent=1 // pred_check
      _
    $region3: #{tpu_custom_call.1} parent=1 // pred_check_branch
      %17 = sbr.rel (0) target = $region5
    $region4: #{tpu_custom_call.1} parent=1 // pred_region
      _
    $region5: #{tpu_custom_call.1} parent=1 // pred_fallthru
      _
    // Predicated region
    $region6: #{tpu_custom_call.1} parent=1 // pred_check
      _
    $region7: #{tpu_custom_call.1} parent=1 // pred_check_branch
      %19 = sbr.rel (0) target = $region9
    $region8: #{tpu_custom_call.1} parent=1 // pred_region
      %s21 = ssub.s32 3200, 3200
      %22 = vsyncadd [#allocation4], %s21
      %s23 = sshll.u32 [#allocation3], 4
      %s24 = int_to_ptr.vmem [resolvable:$true] %s23
      %29 = dma.hbm_to_vmem [thread:$0]  %s1, 3200, %s24, [#allocation4], 128, 128, 8
    $region9: #{tpu_custom_call.1} parent=1 // pred_fallthru
      _
    // Predicated region
    $region10: #{tpu_custom_call.1} parent=1 // pred_check
      _
    $region11: #{tpu_custom_call.1} parent=1 // pred_check_branch
      %31 = sbr.rel (0) target = $region13
    $region12: #{tpu_custom_call.1} parent=1 // pred_region
      _
    $region13: #{tpu_custom_call.1} parent=1 // pred_fallthru
      _
    // Predicated region
    $region14: #{tpu_custom_call.1} parent=1 // pred_check
      _
    $region15: #{tpu_custom_call.1} parent=1 // pred_check_branch
      %33 = sbr.rel (0) target = $region17
    $region16: #{tpu_custom_call.1} parent=1 // pred_region
      %s35 = ssub.s32 4096, 4096
      %36 = vsyncadd [#allocation6], %s35
      %s37 = sshll.u32 [#allocation5], 4
      %s38 = int_to_ptr.vmem [resolvable:$true] %s37
      %43 = dma.hbm_to_vmem [thread:$0]  %s3, 4096, %s38, [#allocation6], 128, 128, 8
    $region17: #{tpu_custom_call.1} parent=1 // pred_fallthru
      _
    // Predicated region
    $region18: #{tpu_custom_call.1} parent=1 // pred_check
      _
    $region19: #{tpu_custom_call.1} parent=1 // pred_check_branch
      %45 = sbr.rel (0) target = $region21
    $region20: #{tpu_custom_call.1} parent=1 // pred_region
      _
    $region21: #{tpu_custom_call.1} parent=1 // pred_fallthru
      _
    // Predicated region
    $region22: #{tpu_custom_call.1} parent=1 // pred_check
      _
    $region23: #{tpu_custom_call.1} parent=1 // pred_check_branch
      %47 = sbr.rel (0) target = $region25
    $region24: #{tpu_custom_call.1} parent=1 // pred_region
      _
    $region25: #{tpu_custom_call.1} parent=1 // pred_fallthru
      _
    // Predicated region
    $region26: #{tpu_custom_call.1} parent=1 // pred_check
      _
    $region27: #{tpu_custom_call.1} parent=1 // pred_check_branch
      %49 = sbr.rel (0) target = $region29
    $region28: #{tpu_custom_call.1} parent=1 // pred_region
      _
    $region29: #{tpu_custom_call.1} parent=1 // pred_fallthru
      _
    // Predicated region
    $region30: #{tpu_custom_call.1} parent=1 // pred_check
      _
    $region31: #{tpu_custom_call.1} parent=1 // pred_check_branch
      %51 = sbr.rel (0) target = $region33
    $region32: #{tpu_custom_call.1} parent=1 // pred_region
      %52 = dma.done [#allocation4], 3200
    $region33: #{tpu_custom_call.1} parent=1 // pred_fallthru
      _
    // Predicated region
    $region34: #{tpu_custom_call.1} parent=1 // pred_check
      _
    $region35: #{tpu_custom_call.1} parent=1 // pred_check_branch
      %54 = sbr.rel (0) target = $region37
    $region36: #{tpu_custom_call.1} parent=1 // pred_region
      %55 = dma.done [#allocation6], 4096
    $region37: #{tpu_custom_call.1} parent=1 // pred_fallthru
      _
    %v57 = vld [vmem:[%s0] sm:$0xff]
    %v58 = vld [vmem:[%s0 + $0x8] sm:$0xff]
    %v59 = vpack.c.bf16 %v57, %v57
    %v60 = vpack.c.bf16 %v58, %v58
    %v61 = vld [vmem:[#allocation3] sm:$0xff]
    %v62 = vld [vmem:[#allocation3 + $0x8] sm:$0xff]
    %v63 = vld [vmem:[#allocation3 + $0x10] sm:$0xff]
    %v64 = vld [vmem:[#allocation3 + $0x18] sm:$0xff]
    %v65 = vld [vmem:[#allocation3 + $0x20] sm:$0xff]
    %v66 = vld [vmem:[#allocation3 + $0x28] sm:$0xff]
    %v67 = vld [vmem:[#allocation3 + $0x30] sm:$0xff]
    %v68 = vld [vmem:[#allocation3 + $0x38] sm:$0xff]
    %v69 = vld [vmem:[#allocation3 + $0x40] sm:$0xff]
    %v70 = vld [vmem:[#allocation3 + $0x48] sm:$0xff]
    %v71 = vld [vmem:[#allocation3 + $0x50] sm:$0xff]
    %v72 = vld [vmem:[#allocation3 + $0x58] sm:$0xff]
    %v73 = vld [vmem:[#allocation3 + $0x60] sm:$0xff]
    %v74 = vld [vmem:[#allocation3 + $0x68] sm:$0xff]
    %v75 = vld [vmem:[#allocation3 + $0x70] sm:$0xff]
    %v76 = vld [vmem:[#allocation3 + $0x78] sm:$0xff]
    %v77 = vld [vmem:[#allocation3 + $0x80] sm:$0xff]
    %v78 = vld [vmem:[#allocation3 + $0x88] sm:$0xff]
    %v79 = vld [vmem:[#allocation3 + $0x90] sm:$0xff]
    %v80 = vld [vmem:[#allocation3 + $0x98] sm:$0xff]
    %v81 = vld [vmem:[#allocation3 + $0xa0] sm:$0xff]
    %v82 = vld [vmem:[#allocation3 + $0xa8] sm:$0xff]
    %v83 = vld [vmem:[#allocation3 + $0xb0] sm:$0xff]
    %v84 = vld [vmem:[#allocation3 + $0xb8] sm:$0xff]
    %v85 = vld [vmem:[#allocation3 + $0xc0] sm:$0xff]
    %v86 = vld [vmem:[%s2] sm:$0x3]
    %v88 = vlaneseq
    %v89 = vshrl.u32 %v88, 7
    %v90 = vsub.s32 0, %v89
    %v91 = vrot.slane %v86, %v90
    %v92 = vlaneseq
    %v93 = vshrl.u32 %v92, 7
    %v94 = vsub.s32 1, %v93
    %v95 = vrot.slane %v86, %v94
    %v123 = vunpack.c.l.b16 %v61
    %v124 = vunpack.c.h.b16 %v61
    %v125 = vunpack.c.l.b16 %v62
    %v126 = vunpack.c.h.b16 %v62
    %v127 = vunpack.c.l.b16 %v63
    %v128 = vunpack.c.h.b16 %v63
    %v129 = vunpack.c.l.b16 %v64
    %v130 = vunpack.c.h.b16 %v64
    %v131 = vunpack.c.l.b16 %v65
    %v132 = vunpack.c.h.b16 %v65
    %v133 = vunpack.c.l.b16 %v66
    %v134 = vunpack.c.h.b16 %v66
    %v135 = vunpack.c.l.b16 %v67
    %v136 = vunpack.c.h.b16 %v67
    %v137 = vunpack.c.l.b16 %v68
    %v138 = vunpack.c.h.b16 %v68
    %v139 = vunpack.c.l.b16 %v69
    %v140 = vunpack.c.h.b16 %v69
    %v141 = vunpack.c.l.b16 %v70
    %v142 = vunpack.c.h.b16 %v70
    %v143 = vunpack.c.l.b16 %v71
    %v144 = vunpack.c.h.b16 %v71
    %v145 = vunpack.c.l.b16 %v72
    %v146 = vunpack.c.h.b16 %v72
    %v147 = vunpack.c.l.b16 %v73
    %v148 = vunpack.c.h.b16 %v73
    %v149 = vunpack.c.l.b16 %v74
    %v150 = vunpack.c.h.b16 %v74
    %v151 = vunpack.c.l.b16 %v75
    %v152 = vunpack.c.h.b16 %v75
    %v153 = vunpack.c.l.b16 %v76
    %v154 = vunpack.c.h.b16 %v76
    %v155 = vunpack.c.l.b16 %v77
    %v156 = vunpack.c.h.b16 %v77
    %v157 = vunpack.c.l.b16 %v78
    %v158 = vunpack.c.h.b16 %v78
    %v159 = vunpack.c.l.b16 %v79
    %v160 = vunpack.c.h.b16 %v79
    %v161 = vunpack.c.l.b16 %v80
    %v162 = vunpack.c.h.b16 %v80
    %v163 = vunpack.c.l.b16 %v81
    %v164 = vunpack.c.h.b16 %v81
    %v165 = vunpack.c.l.b16 %v82
    %v166 = vunpack.c.h.b16 %v82
    %v167 = vunpack.c.l.b16 %v83
    %v168 = vunpack.c.h.b16 %v83
    %v169 = vunpack.c.l.b16 %v84
    %v170 = vunpack.c.h.b16 %v84
    %v171 = vunpack.c.l.b16 %v85
    %v172 = vunpack.c.h.b16 %v85
    %v173 = vpack.c.b16 %v125, %v123
    %v174 = vpack.c.b16 %v126, %v124
    %v175 = vpack.c.b16 %v129, %v127
    %v176 = vpack.c.b16 %v130, %v128
    %v177 = vpack.c.b16 %v133, %v131
    %v178 = vpack.c.b16 %v134, %v132
    %v179 = vpack.c.b16 %v137, %v135
    %v180 = vpack.c.b16 %v138, %v136
    %v181 = vpack.c.b16 %v141, %v139
    %v182 = vpack.c.b16 %v142, %v140
    %v183 = vpack.c.b16 %v145, %v143
    %v184 = vpack.c.b16 %v146, %v144
    %v185 = vpack.c.b16 %v149, %v147
    %v186 = vpack.c.b16 %v150, %v148
    %v187 = vpack.c.b16 %v153, %v151
    %v188 = vpack.c.b16 %v154, %v152
    %v189 = vpack.c.b16 %v157, %v155
    %v190 = vpack.c.b16 %v158, %v156
    %v191 = vpack.c.b16 %v161, %v159
    %v192 = vpack.c.b16 %v162, %v160
    %v193 = vpack.c.b16 %v165, %v163
    %v194 = vpack.c.b16 %v166, %v164
    %v195 = vpack.c.b16 %v169, %v167
    %v196 = vpack.c.b16 %v170, %v168
    %v197 = vpack.c.b16 %v171, %v171
    %v198 = vpack.c.b16 %v172, %v172
    %vm223 = vcmask 588800
    %v225 = vsel %vm223, %v60, 0
    %vm227 = vcmask 1043456
    %v229 = vsel %vm227, %v197, 0
    %v232 = vsel %vm227, %v198, 0
    %234 = vmatprep.subr.bf16.mxu0 %v174
    %235 = vmatpush1.bf16.msra.mxu0 %v173
    %236 = vmatprep.subr.bf16.mxu0 %v176
    %237 = vmatpush1.bf16.msra.mxu0 %v175
    %238 = vmatprep.subr.bf16.mxu0 %v178
    %239 = vmatpush1.bf16.msra.mxu0 %v177
    %240 = vmatprep.subr.bf16.mxu0 %v180
    %241 = vmatpush1.bf16.msra.mxu0 %v179
    %242 = vmatprep.subr.bf16.mxu0 %v182
    %243 = vmatpush1.bf16.msra.mxu0 %v181
    %244 = vmatprep.subr.bf16.mxu0 %v184
    %245 = vmatpush1.bf16.msra.mxu0 %v183
    %246 = vmatprep.subr.bf16.mxu0 %v186
    %247 = vmatpush1.bf16.msra.mxu0 %v185
    %248 = vmatprep.subr.bf16.mxu0 %v188
    %249 = vmatpush1.bf16.msra.mxu0 %v187
    %250 = vmatprep.subr.bf16.mxu0 %v190
    %251 = vmatpush1.bf16.msra.mxu0 %v189
    %252 = vmatprep.subr.bf16.mxu0 %v192
    %253 = vmatpush1.bf16.msra.mxu0 %v191
    %254 = vmatprep.subr.bf16.mxu0 %v194
    %255 = vmatpush1.bf16.msra.mxu0 %v193
    %256 = vmatprep.subr.bf16.mxu0 %v196
    %257 = vmatpush1.bf16.msra.mxu0 %v195
    %258 = vmatprep.subr.bf16.mxu0 %v232
    %259 = vmatpush1.bf16.msra.mxu0 %v229
    %260 = vmatprep.subr.bf16.mxu0 0
    %261 = vmatpush1.bf16.msra.mxu0 0
    %262 = vmatprep.subr.bf16.mxu0 0
    %263 = vmatpush1.bf16.msra.mxu0 0
    %264 = vmatprep.subr.bf16.mxu0 0
    %265 = vmatpush1.bf16.msra.mxu0 0
    %266 = vmatprep.mubr.bf16.mxu0 %v225
    %267 = vmatmul.mubr.bf16.gmra.mrb[0].mxu0 %v59
    %v268 = vpop.f32.mrb[0].mxu0
    %v269 = vadd.f32 %v91, %v268
    %v270 = vpop.f32.mrb[0].mxu0
    %v271 = vadd.f32 %v95, %v270
    %v272 = vpop.f32.mrb[0].mxu0
    %v273 = vpop.f32.mrb[0].mxu0
    %274 = vdwg.mxu0
    %v275 = vmax.f32 %v269, 0.0
    %v276 = vmax.f32 %v271, 0.0
    %v277 = vpack.c.bf16 %v275, %v275
    %v278 = vpack.c.bf16 %v276, %v276
    %v279 = vld [vmem:[#allocation5] sm:$0xff]
    %v280 = vld [vmem:[#allocation5 + $0x8] sm:$0xff]
    %v281 = vld [vmem:[#allocation5 + $0x10] sm:$0xff]
    %v282 = vld [vmem:[#allocation5 + $0x18] sm:$0xff]
    %v283 = vld [vmem:[#allocation5 + $0x20] sm:$0xff]
    %v284 = vld [vmem:[#allocation5 + $0x28] sm:$0xff]
    %v285 = vld [vmem:[#allocation5 + $0x30] sm:$0xff]
    %v286 = vld [vmem:[#allocation5 + $0x38] sm:$0xff]
    %v287 = vld [vmem:[#allocation5 + $0x40] sm:$0xff]
    %v288 = vld [vmem:[#allocation5 + $0x48] sm:$0xff]
    %v289 = vld [vmem:[#allocation5 + $0x50] sm:$0xff]
    %v290 = vld [vmem:[#allocation5 + $0x58] sm:$0xff]
    %v291 = vld [vmem:[#allocation5 + $0x60] sm:$0xff]
    %v292 = vld [vmem:[#allocation5 + $0x68] sm:$0xff]
    %v293 = vld [vmem:[#allocation5 + $0x70] sm:$0xff]
    %v294 = vld [vmem:[#allocation5 + $0x78] sm:$0xff]
    %v295 = vld [vmem:[#allocation5 + $0x80] sm:$0xff]
    %v296 = vld [vmem:[#allocation5 + $0x88] sm:$0xff]
    %v297 = vld [vmem:[#allocation5 + $0x90] sm:$0xff]
    %v298 = vld [vmem:[#allocation5 + $0x98] sm:$0xff]
    %v299 = vld [vmem:[#allocation5 + $0xa0] sm:$0xff]
    %v300 = vld [vmem:[#allocation5 + $0xa8] sm:$0xff]
    %v301 = vld [vmem:[#allocation5 + $0xb0] sm:$0xff]
    %v302 = vld [vmem:[#allocation5 + $0xb8] sm:$0xff]
    %v303 = vld [vmem:[#allocation5 + $0xc0] sm:$0xff]
    %v304 = vld [vmem:[#allocation5 + $0xc8] sm:$0xff]
    %v305 = vld [vmem:[#allocation5 + $0xd0] sm:$0xff]
    %v306 = vld [vmem:[#allocation5 + $0xd8] sm:$0xff]
    %v307 = vld [vmem:[#allocation5 + $0xe0] sm:$0xff]
    %v308 = vld [vmem:[#allocation5 + $0xe8] sm:$0xff]
    %v309 = vld [vmem:[#allocation5 + $0xf0] sm:$0xff]
    %v310 = vld [vmem:[#allocation5 + $0xf8] sm:$0xff]
    %v311 = vld [vmem:[%s4] sm:$0x3]
    %v313 = vlaneseq
    %v314 = vshrl.u32 %v313, 7
    %v315 = vsub.s32 0, %v314
    %v316 = vrot.slane %v311, %v315
    %v317 = vlaneseq
    %v318 = vshrl.u32 %v317, 7
    %v319 = vsub.s32 1, %v318
    %v320 = vrot.slane %v311, %v319
    %v355 = vunpack.c.l.b16 %v279
    %v356 = vunpack.c.h.b16 %v279
    %v357 = vunpack.c.l.b16 %v280
    %v358 = vunpack.c.h.b16 %v280
    %v359 = vunpack.c.l.b16 %v281
    %v360 = vunpack.c.h.b16 %v281
    %v361 = vunpack.c.l.b16 %v282
    %v362 = vunpack.c.h.b16 %v282
    %v363 = vunpack.c.l.b16 %v283
    %v364 = vunpack.c.h.b16 %v283
    %v365 = vunpack.c.l.b16 %v284
    %v366 = vunpack.c.h.b16 %v284
    %v367 = vunpack.c.l.b16 %v285
    %v368 = vunpack.c.h.b16 %v285
    %v369 = vunpack.c.l.b16 %v286
    %v370 = vunpack.c.h.b16 %v286
    %v371 = vunpack.c.l.b16 %v287
    %v372 = vunpack.c.h.b16 %v287
    %v373 = vunpack.c.l.b16 %v288
    %v374 = vunpack.c.h.b16 %v288
    %v375 = vunpack.c.l.b16 %v289
    %v376 = vunpack.c.h.b16 %v289
    %v377 = vunpack.c.l.b16 %v290
    %v378 = vunpack.c.h.b16 %v290
    %v379 = vunpack.c.l.b16 %v291
    %v380 = vunpack.c.h.b16 %v291
    %v381 = vunpack.c.l.b16 %v292
    %v382 = vunpack.c.h.b16 %v292
    %v383 = vunpack.c.l.b16 %v293
    %v384 = vunpack.c.h.b16 %v293
    %v385 = vunpack.c.l.b16 %v294
    %v386 = vunpack.c.h.b16 %v294
    %v387 = vunpack.c.l.b16 %v295
    %v388 = vunpack.c.h.b16 %v295
    %v389 = vunpack.c.l.b16 %v296
    %v390 = vunpack.c.h.b16 %v296
    %v391 = vunpack.c.l.b16 %v297
    %v392 = vunpack.c.h.b16 %v297
    %v393 = vunpack.c.l.b16 %v298
    %v394 = vunpack.c.h.b16 %v298
    %v395 = vunpack.c.l.b16 %v299
    %v396 = vunpack.c.h.b16 %v299
    %v397 = vunpack.c.l.b16 %v300
    %v398 = vunpack.c.h.b16 %v300
    %v399 = vunpack.c.l.b16 %v301
    %v400 = vunpack.c.h.b16 %v301
    %v401 = vunpack.c.l.b16 %v302
    %v402 = vunpack.c.h.b16 %v302
    %v403 = vunpack.c.l.b16 %v303
    %v404 = vunpack.c.h.b16 %v303
    %v405 = vunpack.c.l.b16 %v304
    %v406 = vunpack.c.h.b16 %v304
    %v407 = vunpack.c.l.b16 %v305
    %v408 = vunpack.c.h.b16 %v305
    %v409 = vunpack.c.l.b16 %v306
    %v410 = vunpack.c.h.b16 %v306
    %v411 = vunpack.c.l.b16 %v307
    %v412 = vunpack.c.h.b16 %v307
    %v413 = vunpack.c.l.b16 %v308
    %v414 = vunpack.c.h.b16 %v308
    %v415 = vunpack.c.l.b16 %v309
    %v416 = vunpack.c.h.b16 %v309
    %v417 = vunpack.c.l.b16 %v310
    %v418 = vunpack.c.h.b16 %v310
    %v419 = vpack.c.b16 %v357, %v355
    %v420 = vpack.c.b16 %v358, %v356
    %v421 = vpack.c.b16 %v361, %v359
    %v422 = vpack.c.b16 %v362, %v360
    %v423 = vpack.c.b16 %v365, %v363
    %v424 = vpack.c.b16 %v366, %v364
    %v425 = vpack.c.b16 %v369, %v367
    %v426 = vpack.c.b16 %v370, %v368
    %v427 = vpack.c.b16 %v373, %v371
    %v428 = vpack.c.b16 %v374, %v372
    %v429 = vpack.c.b16 %v377, %v375
    %v430 = vpack.c.b16 %v378, %v376
    %v431 = vpack.c.b16 %v381, %v379
    %v432 = vpack.c.b16 %v382, %v380
    %v433 = vpack.c.b16 %v385, %v383
    %v434 = vpack.c.b16 %v386, %v384
    %v435 = vpack.c.b16 %v389, %v387
    %v436 = vpack.c.b16 %v390, %v388
    %v437 = vpack.c.b16 %v393, %v391
    %v438 = vpack.c.b16 %v394, %v392
    %v439 = vpack.c.b16 %v397, %v395
    %v440 = vpack.c.b16 %v398, %v396
    %v441 = vpack.c.b16 %v401, %v399
    %v442 = vpack.c.b16 %v402, %v400
    %v443 = vpack.c.b16 %v405, %v403
    %v444 = vpack.c.b16 %v406, %v404
    %v445 = vpack.c.b16 %v409, %v407
    %v446 = vpack.c.b16 %v410, %v408
    %v447 = vpack.c.b16 %v413, %v411
    %v448 = vpack.c.b16 %v414, %v412
    %v449 = vpack.c.b16 %v417, %v415
    %v450 = vpack.c.b16 %v418, %v416
    %483 = vmatprep.subr.bf16.mxu0 %v420
    %484 = vmatpush1.bf16.msra.mxu0 %v419
    %485 = vmatprep.subr.bf16.mxu0 %v422
    %486 = vmatpush1.bf16.msra.mxu0 %v421
    %487 = vmatprep.subr.bf16.mxu0 %v424
    %488 = vmatpush1.bf16.msra.mxu0 %v423
    %489 = vmatprep.subr.bf16.mxu0 %v426
    %490 = vmatpush1.bf16.msra.mxu0 %v425
    %491 = vmatprep.subr.bf16.mxu0 %v428
    %492 = vmatpush1.bf16.msra.mxu0 %v427
    %493 = vmatprep.subr.bf16.mxu0 %v430
    %494 = vmatpush1.bf16.msra.mxu0 %v429
    %495 = vmatprep.subr.bf16.mxu0 %v432
    %496 = vmatpush1.bf16.msra.mxu0 %v431
    %497 = vmatprep.subr.bf16.mxu0 %v434
    %498 = vmatpush1.bf16.msra.mxu0 %v433
    %499 = vmatprep.subr.bf16.mxu0 %v436
    %500 = vmatpush1.bf16.msra.mxu0 %v435
    %501 = vmatprep.subr.bf16.mxu0 %v438
    %502 = vmatpush1.bf16.msra.mxu0 %v437
    %503 = vmatprep.subr.bf16.mxu0 %v440
    %504 = vmatpush1.bf16.msra.mxu0 %v439
    %505 = vmatprep.subr.bf16.mxu0 %v442
    %506 = vmatpush1.bf16.msra.mxu0 %v441
    %507 = vmatprep.subr.bf16.mxu0 %v444
    %508 = vmatpush1.bf16.msra.mxu0 %v443
    %509 = vmatprep.subr.bf16.mxu0 %v446
    %510 = vmatpush1.bf16.msra.mxu0 %v445
    %511 = vmatprep.subr.bf16.mxu0 %v448
    %512 = vmatpush1.bf16.msra.mxu0 %v447
    %513 = vmatprep.subr.bf16.mxu0 %v450
    %514 = vmatpush1.bf16.msra.mxu0 %v449
    %515 = vmatprep.mubr.bf16.mxu0 %v278
    %516 = vmatmul.mubr.bf16.gmra.mrb[0].mxu0 %v277
    %v517 = vpop.f32.mrb[0].mxu0
    %v518 = vadd.f32 %v316, %v517
    %v519 = vpop.f32.mrb[0].mxu0
    %v520 = vadd.f32 %v320, %v519
    %v521 = vpop.f32.mrb[0].mxu0
    %v522 = vpop.f32.mrb[0].mxu0
    %523 = vdwg.mxu0
    %v524 = vmax.f32 %v518, 0.0
    %v525 = vmax.f32 %v520, 0.0
    %v526 = vpack.c.bf16 %v524, %v524
    %v527 = vpack.c.bf16 %v525, %v525
    %v528 = vld [vmem:[%s5] sm:$0xf]
    %v529 = vld [vmem:[%s5 + $0x4] sm:$0xf]
    %v530 = vld [vmem:[%s5 + $0x8] sm:$0xf]
    %v531 = vld [vmem:[%s5 + $0xc] sm:$0xf]
    %v532 = vld [vmem:[%s5 + $0x10] sm:$0xf]
    %v533 = vld [vmem:[%s5 + $0x14] sm:$0xf]
    %v534 = vld [vmem:[%s5 + $0x18] sm:$0xf]
    %v535 = vld [vmem:[%s5 + $0x1c] sm:$0xf]
    %v536 = vld [vmem:[%s5 + $0x20] sm:$0xf]
    %v537 = vld [vmem:[%s5 + $0x24] sm:$0xf]
    %v538 = vld [vmem:[%s5 + $0x28] sm:$0xf]
    %v539 = vld [vmem:[%s5 + $0x2c] sm:$0xf]
    %v540 = vld [vmem:[%s5 + $0x30] sm:$0xf]
    %v541 = vld [vmem:[%s5 + $0x34] sm:$0xf]
    %v542 = vld [vmem:[%s5 + $0x38] sm:$0xf]
    %v543 = vld [vmem:[%s5 + $0x3c] sm:$0xf]
    %v544 = vld [vmem:[%s5 + $0x40] sm:$0xf]
    %v545 = vld [vmem:[%s5 + $0x44] sm:$0xf]
    %v546 = vld [vmem:[%s5 + $0x48] sm:$0xf]
    %v547 = vld [vmem:[%s5 + $0x4c] sm:$0xf]
    %v548 = vld [vmem:[%s5 + $0x50] sm:$0xf]
    %v549 = vld [vmem:[%s5 + $0x54] sm:$0xf]
    %v550 = vld [vmem:[%s5 + $0x58] sm:$0xf]
    %v551 = vld [vmem:[%s5 + $0x5c] sm:$0xf]
    %v552 = vld [vmem:[%s5 + $0x60] sm:$0xf]
    %v553 = vld [vmem:[%s5 + $0x64] sm:$0xf]
    %v554 = vld [vmem:[%s5 + $0x68] sm:$0xf]
    %v555 = vld [vmem:[%s5 + $0x6c] sm:$0xf]
    %v556 = vld [vmem:[%s5 + $0x70] sm:$0xf]
    %v557 = vld [vmem:[%s5 + $0x74] sm:$0xf]
    %v558 = vld [vmem:[%s5 + $0x78] sm:$0xf]
    %v559 = vld [vmem:[%s5 + $0x7c] sm:$0xf]
    %v560 = vld [vmem:[#allocation2] sm:$0x1]
    %v562 = vlaneseq
    %v563 = vshrl.u32 %v562, 7
    %v564 = vsub.s32 0, %v563
    %v565 = vrot.slane %v560, %v564
    %v599 = vunpack.c.l.b16 %v528
    %v600 = vunpack.c.l.b16 %v529
    %v601 = vunpack.c.l.b16 %v530
    %v602 = vunpack.c.l.b16 %v531
    %v603 = vunpack.c.l.b16 %v532
    %v604 = vunpack.c.l.b16 %v533
    %v605 = vunpack.c.l.b16 %v534
    %v606 = vunpack.c.l.b16 %v535
    %v607 = vunpack.c.l.b16 %v536
    %v608 = vunpack.c.l.b16 %v537
    %v609 = vunpack.c.l.b16 %v538
    %v610 = vunpack.c.l.b16 %v539
    %v611 = vunpack.c.l.b16 %v540
    %v612 = vunpack.c.l.b16 %v541
    %v613 = vunpack.c.l.b16 %v542
    %v614 = vunpack.c.l.b16 %v543
    %v615 = vunpack.c.l.b16 %v544
    %v616 = vunpack.c.l.b16 %v545
    %v617 = vunpack.c.l.b16 %v546
    %v618 = vunpack.c.l.b16 %v547
    %v619 = vunpack.c.l.b16 %v548
    %v620 = vunpack.c.l.b16 %v549
    %v621 = vunpack.c.l.b16 %v550
    %v622 = vunpack.c.l.b16 %v551
    %v623 = vunpack.c.l.b16 %v552
    %v624 = vunpack.c.l.b16 %v553
    %v625 = vunpack.c.l.b16 %v554
    %v626 = vunpack.c.l.b16 %v555
    %v627 = vunpack.c.l.b16 %v556
    %v628 = vunpack.c.l.b16 %v557
    %v629 = vunpack.c.l.b16 %v558
    %v630 = vunpack.c.l.b16 %v559
    %v631 = vpack.c.b16 %v600, %v599
    %v632 = vpack.c.b16 %v602, %v601
    %v633 = vpack.c.b16 %v604, %v603
    %v634 = vpack.c.b16 %v606, %v605
    %v635 = vpack.c.b16 %v608, %v607
    %v636 = vpack.c.b16 %v610, %v609
    %v637 = vpack.c.b16 %v612, %v611
    %v638 = vpack.c.b16 %v614, %v613
    %v639 = vpack.c.b16 %v616, %v615
    %v640 = vpack.c.b16 %v618, %v617
    %v641 = vpack.c.b16 %v620, %v619
    %v642 = vpack.c.b16 %v622, %v621
    %v643 = vpack.c.b16 %v624, %v623
    %v644 = vpack.c.b16 %v626, %v625
    %v645 = vpack.c.b16 %v628, %v627
    %v646 = vpack.c.b16 %v630, %v629
    %663 = vmatprep.subr.bf16.mxu0 0
    %664 = vmatpush1.bf16.msra.mxu0 %v631
    %665 = vmatprep.subr.bf16.mxu0 0
    %666 = vmatpush1.bf16.msra.mxu0 %v632
    %667 = vmatprep.subr.bf16.mxu0 0
    %668 = vmatpush1.bf16.msra.mxu0 %v633
    %669 = vmatprep.subr.bf16.mxu0 0
    %670 = vmatpush1.bf16.msra.mxu0 %v634
    %671 = vmatprep.subr.bf16.mxu0 0
    %672 = vmatpush1.bf16.msra.mxu0 %v635
    %673 = vmatprep.subr.bf16.mxu0 0
    %674 = vmatpush1.bf16.msra.mxu0 %v636
    %675 = vmatprep.subr.bf16.mxu0 0
    %676 = vmatpush1.bf16.msra.mxu0 %v637
    %677 = vmatprep.subr.bf16.mxu0 0
    %678 = vmatpush1.bf16.msra.mxu0 %v638
    %679 = vmatprep.subr.bf16.mxu0 0
    %680 = vmatpush1.bf16.msra.mxu0 %v639
    %681 = vmatprep.subr.bf16.mxu0 0
    %682 = vmatpush1.bf16.msra.mxu0 %v640
    %683 = vmatprep.subr.bf16.mxu0 0
    %684 = vmatpush1.bf16.msra.mxu0 %v641
    %685 = vmatprep.subr.bf16.mxu0 0
    %686 = vmatpush1.bf16.msra.mxu0 %v642
    %687 = vmatprep.subr.bf16.mxu0 0
    %688 = vmatpush1.bf16.msra.mxu0 %v643
    %689 = vmatprep.subr.bf16.mxu0 0
    %690 = vmatpush1.bf16.msra.mxu0 %v644
    %691 = vmatprep.subr.bf16.mxu0 0
    %692 = vmatpush1.bf16.msra.mxu0 %v645
    %693 = vmatprep.subr.bf16.mxu0 0
    %694 = vmatpush1.bf16.msra.mxu0 %v646
    %695 = vmatprep.mubr.bf16.mxu0 %v527
    %696 = vmatmul.mubr.bf16.gmra.mrb[0].mxu0 %v526
    %v697 = vpop.f32.mrb[0].mxu0
    %v698 = vadd.f32 %v565, %v697
    %v699 = vpop.f32.mrb[0].mxu0
    %v700 = vpop.f32.mrb[0].mxu0
    %v701 = vpop.f32.mrb[0].mxu0
    %702 = vdwg.mxu0
    %vm703 = vcmask 7168
    %704 = vst.msk [vmem:[%s7] sm:$0xff] %vm703, %v698
    // Predicated region
    $region38: #{tpu_custom_call.1} parent=1 // pred_check
      _
    $region39: #{tpu_custom_call.1} parent=1 // pred_check_branch
      %706 = sbr.rel (0) target = $region41
    $region40: #{tpu_custom_call.1} parent=1 // pred_region
      _
    $region41: #{tpu_custom_call.1} parent=1 // pred_fallthru
      _
    // Predicated region
    $region42: #{tpu_custom_call.1} parent=1 // pred_check
      _
    $region43: #{tpu_custom_call.1} parent=1 // pred_check_branch
      %708 = sbr.rel (0) target = $region45
    $region44: #{tpu_custom_call.1} parent=1 // pred_region
      _
    $region45: #{tpu_custom_call.1} parent=1 // pred_fallthru
      _
    %709 = vsyncpa [#allocation4], 1
    %710 = vsyncpa [#allocation6], 1

</llo_original>
